<compile_context>
chip_gen: v7x
topology: tpu7x:2x2x1
jax: 0.10.0
libtpu: 0.0.40
codegen_flags: <defaults>
</compile_context>

<pallas_src>
import functools
import math

import jax
import jax.numpy as jnp
from jax import lax
from jax.experimental import pallas as pl
from jax.experimental.pallas import tpu as pltpu


def _round_up(v, mult):
    return ((v + mult - 1) // mult) * mult


def _vmem_capacity_bytes():
    """Per-TensorCore VMEM capacity; conservative fallback if query fails."""
    try:
        info = pltpu.get_tpu_info()
        cap = getattr(info, "vmem_capacity_bytes", None)
        if cap:
            return int(cap)
    except Exception:
        pass
    return 64 * 1024 * 1024   # v7x per-core value (smallest of the targets)


# ---------------------------------------------------------------------------
# Row-resident variant: one HBM read of x, grid = (batch_tiles,)
# ---------------------------------------------------------------------------
def _aam_resident_kernel(x_ref, label_ref, loss_ref, *,
                         cos_m, sin_m, th, mm, s, n_batch, row_pad):
    x = x_ref[...].astype(jnp.float32)                     # (TB, N)

    # F.normalize over the class dim (eps = 1e-12, as in torch).
    ssq = jnp.sum(x * x, axis=-1, keepdims=True)
    inv_norm = 1.0 / jnp.maximum(jnp.sqrt(ssq), 1e-12)
    cosine = x * inv_norm

    sine = jnp.sqrt(jnp.maximum(1.0 - cosine * cosine, 0.0))
    phi = cosine * cos_m - sine * sin_m
    phi = jnp.where(cosine - th > 0.0, phi, cosine - mm)

    col = lax.broadcasted_iota(jnp.int32, x.shape, 1)
    is_target = col == label_ref[...]                      # no float one_hot
    out = jnp.where(is_target, phi, cosine) * s

    # Cross-entropy with a STATIC softmax max: |logit| <= s, so exp(out - s)
    # can never overflow; underflow is harmless in f32.
    l = jnp.sum(jnp.exp(out - s), axis=-1, keepdims=True)
    t = jnp.sum(jnp.where(is_target, out, 0.0), axis=-1, keepdims=True)
    per_row = s + jnp.log(l) - t

    if row_pad:
        tb = loss_ref.shape[0]
        row = lax.broadcasted_iota(jnp.int32, (tb, 1), 0) + pl.program_id(0) * tb
        per_row = jnp.where(row < n_batch, per_row, 0.0)   # select, not multiply
    loss_ref[...] = per_row


# ---------------------------------------------------------------------------
# Streaming variant: class axis streamed, 2 passes over x (norm, then margin)
# ---------------------------------------------------------------------------
def _aam_stream_kernel(x_ref, label_ref, loss_ref,
                       ssq_ref, l_ref, t_ref, *,
                       cos_m, sin_m, th, mm, s,
                       n_class, n_batch, col_pad, row_pad):
    b = pl.program_id(0)
    p = pl.program_id(1)          # 0: row-norm pass, 1: margin + softmax pass
    k = pl.program_id(2)
    nk = pl.num_programs(2)

    x = x_ref[...].astype(jnp.float32)                     # (TB, TN)
    tb, tn = x.shape
    col = lax.broadcasted_iota(jnp.int32, (tb, tn), 1) + k * tn

    @pl.when(jnp.logical_and(p == 0, k == 0))
    def _():
        ssq_ref[...] = jnp.zeros(ssq_ref.shape, jnp.float32)
        l_ref[...] = jnp.zeros(l_ref.shape, jnp.float32)
        t_ref[...] = jnp.zeros(t_ref.shape, jnp.float32)

    # ---- pass 0: sum of squares (mask only on the ragged last class tile) ----
    def _ssq_update(masked):
        xv = jnp.where(col < n_class, x, 0.0) if masked else x
        ssq_ref[...] += jnp.sum(xv * xv, axis=-1, keepdims=True)

    if col_pad:
        pl.when(jnp.logical_and(p == 0, k < nk - 1))(
            functools.partial(_ssq_update, False))
        pl.when(jnp.logical_and(p == 0, k == nk - 1))(
            functools.partial(_ssq_update, True))
    else:
        pl.when(p == 0)(functools.partial(_ssq_update, False))

    @pl.when(jnp.logical_and(p == 0, k == nk - 1))
    def _():
        # convert in place to 1 / max(||x||_2, 1e-12)
        ssq_ref[...] = 1.0 / jnp.maximum(jnp.sqrt(ssq_ref[...]), 1e-12)

    # ---- pass 1: margin + softmax accumulation (static max = s) ----
    def _margin_update(masked):
        inv_norm = ssq_ref[...]                            # (TB, 1)
        cosine = x * inv_norm
        sine = jnp.sqrt(jnp.maximum(1.0 - cosine * cosine, 0.0))
        phi = cosine * cos_m - sine * sin_m
        phi = jnp.where(cosine - th > 0.0, phi, cosine - mm)
        is_target = col == label_ref[...]
        out = jnp.where(is_target, phi, cosine) * s
        if masked:
            out = jnp.where(col < n_class, out, -1e30)     # drop padded classes
        l_ref[...] += jnp.sum(jnp.exp(out - s), axis=-1, keepdims=True)
        t_ref[...] += jnp.sum(jnp.where(is_target, out, 0.0),
                              axis=-1, keepdims=True)

    if col_pad:
        pl.when(jnp.logical_and(p == 1, k < nk - 1))(
            functools.partial(_margin_update, False))
        pl.when(jnp.logical_and(p == 1, k == nk - 1))(
            functools.partial(_margin_update, True))
    else:
        pl.when(p == 1)(functools.partial(_margin_update, False))

    @pl.when(jnp.logical_and(p == 1, k == nk - 1))
    def _():
        per_row = s + jnp.log(l_ref[...]) - t_ref[...]
        if row_pad:
            tb_ = loss_ref.shape[0]
            row = lax.broadcasted_iota(jnp.int32, (tb_, 1), 0) + b * tb_
            per_row = jnp.where(row < n_batch, per_row, 0.0)
        loss_ref[...] = per_row


# ---------------------------------------------------------------------------
# Wrapper
# ---------------------------------------------------------------------------
def aam_forward(x, label, *, m, s, tb=None, tn=None, variant="auto"):
    """Forward pass of the AAM module. Returns the scalar mean CE loss."""
    B, n_class = x.shape

    cos_m = math.cos(m)
    sin_m = math.sin(m)
    th = math.cos(math.pi - m)
    mm = math.sin(math.pi - m) * m

    cap = _vmem_capacity_bytes()
    vmem_limit = (cap * 3) // 4          # v7x -> 48 MiB, v5e/v6e -> 96 MiB
    resident_budget = (cap * 3) // 8     # v7x -> 24 MiB, v5e/v6e -> 48 MiB

    # Batch tile: sublane-aligned; on v7x make sure >= 2 tiles so both
    # TensorCores get work on the "parallel" batch axis.
    if tb is None:
        tb = min(128, _round_up(B, 8))
        if B > 8 and pl.cdiv(B, tb) < 2:
            tb = max(8, _round_up(pl.cdiv(B, 2), 8))
    tb = _round_up(tb, 8)

    x_itemsize = jnp.dtype(x.dtype).itemsize
    n_lanes = _round_up(n_class, 128)

    def _resident_estimate(tb_):
        # double-buffered input slab + ~8 live f32 intermediates (conservative)
        return tb_ * n_lanes * (2 * x_itemsize + 8 * 4)

    use_resident = (variant == "resident")
    if variant == "auto":
        tb_res = tb
        while tb_res > 8 and _resident_estimate(tb_res) > resident_budget:
            tb_res = _round_up(tb_res // 2, 8)
        if _resident_estimate(tb_res) <= resident_budget:
            use_resident = True
            tb = tb_res

    # labels as a (B, 1) int32 column; tiny, so the reshape/cast is negligible.
    label2 = label.astype(jnp.int32).reshape(B, 1)
    b_tiles = pl.cdiv(B, tb)
    row_pad = (B % tb) != 0

    if use_resident:
        kernel = functools.partial(
            _aam_resident_kernel, cos_m=cos_m, sin_m=sin_m, th=th, mm=mm, s=s,
            n_batch=B, row_pad=row_pad)
        per_row = pl.pallas_call(
            kernel,
            out_shape=jax.ShapeDtypeStruct((B, 1), jnp.float32),
            grid_spec=pltpu.PrefetchScalarGridSpec(
                num_scalar_prefetch=0,
                grid=(b_tiles,),
                in_specs=[
                    # full class extent resident in VMEM -> x read once from HBM
                    pl.BlockSpec((tb, n_class), lambda b: (b, 0)),
                    pl.BlockSpec((tb, 1), lambda b: (b, 0)),
                ],
                out_specs=pl.BlockSpec((tb, 1), lambda b: (b, 0)),
            ),
            compiler_params=pltpu.CompilerParams(
                dimension_semantics=("parallel",),
                vmem_limit_bytes=vmem_limit,
            ),
        )(x, label2)
    else:
        if tn is None:
            tn = min(2048, _round_up(n_class, 128))
        tn = _round_up(tn, 128)
        n_tiles = pl.cdiv(n_class, tn)
        col_pad = (n_class % tn) != 0

        kernel = functools.partial(
            _aam_stream_kernel, cos_m=cos_m, sin_m=sin_m, th=th, mm=mm, s=s,
            n_class=n_class, n_batch=B, col_pad=col_pad, row_pad=row_pad)
        per_row = pl.pallas_call(
            kernel,
            out_shape=jax.ShapeDtypeStruct((B, 1), jnp.float32),
            grid_spec=pltpu.PrefetchScalarGridSpec(
                num_scalar_prefetch=0,
                grid=(b_tiles, 2, n_tiles),
                in_specs=[
                    pl.BlockSpec((tb, tn), lambda b, p, k: (b, k)),
                    pl.BlockSpec((tb, 1), lambda b, p, k: (b, 0)),
                ],
                out_specs=pl.BlockSpec((tb, 1), lambda b, p, k: (b, 0)),
                scratch_shapes=[
                    pltpu.VMEM((tb, 1), jnp.float32),   # sum-of-squares / inv-norm
                    pltpu.VMEM((tb, 1), jnp.float32),   # running exp-sum
                    pltpu.VMEM((tb, 1), jnp.float32),   # target logit
                ],
            ),
            compiler_params=pltpu.CompilerParams(
                dimension_semantics=("parallel", "arbitrary", "arbitrary"),
                vmem_limit_bytes=vmem_limit,
            ),
        )(x, label2)

    # tiny final mean over per-row losses in plain JAX
    return jnp.sum(per_row) / B


def _aam_reference(x, label, *, m, s):
    x = x.astype(jnp.float32)
    xn = x / jnp.maximum(jnp.linalg.norm(x, axis=-1, keepdims=True), 1e-12)
    cosine = xn
    sine = jnp.sqrt(jnp.clip(1.0 - cosine ** 2, 0.0, 1.0))
    phi = cosine * math.cos(m) - sine * math.sin(m)
    phi = jnp.where(cosine - math.cos(math.pi - m) > 0.0, phi,
                    cosine - math.sin(math.pi - m) * m)
    oh = jax.nn.one_hot(label, x.shape[1], dtype=jnp.float32)
    out = (oh * phi + (1.0 - oh) * cosine) * s
    return jnp.mean(jax.nn.logsumexp(out, axis=-1) - jnp.sum(oh * out, axis=-1))


if __name__ == "__main__":
    m_margin, s_scale = 0.2, 30.0
    key = jax.random.PRNGKey(0)
    k1, k2, k3, k4 = jax.random.split(key, 4)

    # Case 1: tiny shapes consistent with the module (batch=8, n_class=16);
    # row-resident single-pass path.
    x1 = jax.random.normal(k1, (8, 16), dtype=jnp.float32)
    y1 = jax.random.randint(k2, (8,), 0, 16, dtype=jnp.int32)
    loss1 = aam_forward(x1, y1, m=m_margin, s=s_scale)
    jax.block_until_ready(loss1)
    ref1 = _aam_reference(x1, y1, m=m_margin, s=s_scale)
    assert jnp.allclose(loss1, ref1, atol=1e-4, rtol=1e-4), (loss1, ref1)

    # Case 2: ragged batch (no wrapper padding) + bf16 input kept bf16 at the
    # HBM boundary; row-resident path with 2 batch tiles and masked edge rows.
    x2 = jax.random.normal(k3, (20, 300), dtype=jnp.float32)
    y2 = jax.random.randint(k4, (20,), 0, 300, dtype=jnp.int32)
    x2_bf16 = x2.astype(jnp.bfloat16)
    loss2 = aam_forward(x2_bf16, y2, m=m_margin, s=s_scale)
    jax.block_until_ready(loss2)
    ref2 = _aam_reference(x2_bf16, y2, m=m_margin, s=s_scale)
    assert jnp.allclose(loss2, ref2, atol=1e-4, rtol=1e-4), (loss2, ref2)

    # Case 3: force the streaming 2-pass path (ragged class tiles + masked
    # last class tile + static-max logsumexp accumulation).
    loss3 = aam_forward(x2, y2, m=m_margin, s=s_scale,
                        tb=8, tn=128, variant="streaming")
    jax.block_until_ready(loss3)
    ref3 = _aam_reference(x2, y2, m=m_margin, s=s_scale)
    assert jnp.allclose(loss3, ref3, atol=1e-4, rtol=1e-4), (loss3, ref3)

    print("KERNEL_OK")
</pallas_src>

<mosaic_0001>
module attributes {stable_mosaic.version = 11 : i64} {
  func.func @_aam_resident_kernel(%arg0: i32, %arg1: memref<8x16xf32, #tpu.memory_space<vmem>>, %arg2: memref<8x1xi32, #tpu.memory_space<vmem>>, %arg3: memref<8x1xf32, #tpu.memory_space<vmem>>) attributes {dimension_semantics = [#tpu.dimension_semantics<parallel>], iteration_bounds = array<i64: 1>, scalar_prefetch = 0 : i64, scratch_operands = 0 : i64, tpu.core_type = #tpu.core_type<tc>, window_params = [{transform_indices = @transform_0, window_bounds = array<i64: 8, 16>}, {transform_indices = @transform_1, window_bounds = array<i64: 8, 1>}, {transform_indices = @transform_2, window_bounds = array<i64: 8, 1>}]} {
    %c0 = arith.constant 0 : index
    %c0_0 = arith.constant 0 : index
    %0 = vector.load %arg1[%c0, %c0_0] : memref<8x16xf32, #tpu.memory_space<vmem>>, vector<8x16xf32>
    %1 = arith.mulf %0, %0 : vector<8x16xf32>
    %cst = arith.constant dense<0.000000e+00> : vector<8xf32>
    %2 = vector.multi_reduction <add>, %1, %cst [1] : vector<8x16xf32> to vector<8xf32>
    %3 = vector.shape_cast %2 : vector<8xf32> to vector<8x1xf32>
    %4 = math.sqrt %3 : vector<8x1xf32>
    %cst_1 = arith.constant 9.99999996E-13 : f32
    %5 = vector.broadcast %cst_1 : f32 to vector<8x1xf32>
    %6 = arith.maximumf %4, %5 : vector<8x1xf32>
    %cst_2 = arith.constant 1.000000e+00 : f32
    %7 = vector.broadcast %cst_2 : f32 to vector<8x1xf32>
    %8 = arith.divf %7, %6 : vector<8x1xf32>
    %9 = vector.broadcast %8 : vector<8x1xf32> to vector<8x16xf32>
    %10 = arith.mulf %0, %9 : vector<8x16xf32>
    %11 = arith.mulf %10, %10 : vector<8x16xf32>
    %cst_3 = arith.constant 1.000000e+00 : f32
    %12 = vector.broadcast %cst_3 : f32 to vector<8x16xf32>
    %13 = arith.subf %12, %11 : vector<8x16xf32>
    %cst_4 = arith.constant 0.000000e+00 : f32
    %14 = vector.broadcast %cst_4 : f32 to vector<8x16xf32>
    %15 = arith.maximumf %13, %14 : vector<8x16xf32>
    %16 = math.sqrt %15 : vector<8x16xf32>
    %cst_5 = arith.constant 0.980066597 : f32
    %17 = vector.broadcast %cst_5 : f32 to vector<8x16xf32>
    %18 = arith.mulf %10, %17 : vector<8x16xf32>
    %cst_6 = arith.constant 0.198669329 : f32
    %19 = vector.broadcast %cst_6 : f32 to vector<8x16xf32>
    %20 = arith.mulf %16, %19 : vector<8x16xf32>
    %21 = arith.subf %18, %20 : vector<8x16xf32>
    %cst_7 = arith.constant -0.980066597 : f32
    %22 = vector.broadcast %cst_7 : f32 to vector<8x16xf32>
    %23 = arith.subf %10, %22 : vector<8x16xf32>
    %cst_8 = arith.constant 0.000000e+00 : f32
    %24 = vector.broadcast %cst_8 : f32 to vector<8x16xf32>
    %25 = arith.cmpf ogt, %23, %24 : vector<8x16xf32>
    %cst_9 = arith.constant 0.0397338644 : f32
    %26 = vector.broadcast %cst_9 : f32 to vector<8x16xf32>
    %27 = arith.subf %10, %26 : vector<8x16xf32>
    %28 = arith.select %25, %21, %27 : vector<8x16xi1>, vector<8x16xf32>
    %29 = tpu.iota {dimensions = array<i32: 1>} : vector<8x16xi32>
    %c0_10 = arith.constant 0 : index
    %c0_11 = arith.constant 0 : index
    %30 = vector.load %arg2[%c0_10, %c0_11] : memref<8x1xi32, #tpu.memory_space<vmem>>, vector<8x1xi32>
    %31 = vector.broadcast %30 : vector<8x1xi32> to vector<8x16xi32>
    %32 = arith.cmpi eq, %29, %31 : vector<8x16xi32>
    %33 = arith.select %32, %28, %10 : vector<8x16xi1>, vector<8x16xf32>
    %cst_12 = arith.constant 3.000000e+01 : f32
    %34 = vector.broadcast %cst_12 : f32 to vector<8x16xf32>
    %35 = arith.mulf %33, %34 : vector<8x16xf32>
    %cst_13 = arith.constant 3.000000e+01 : f32
    %36 = vector.broadcast %cst_13 : f32 to vector<8x16xf32>
    %37 = arith.subf %35, %36 : vector<8x16xf32>
    %38 = math.exp %37 : vector<8x16xf32>
    %cst_14 = arith.constant dense<0.000000e+00> : vector<8xf32>
    %39 = vector.multi_reduction <add>, %38, %cst_14 [1] : vector<8x16xf32> to vector<8xf32>
    %40 = vector.shape_cast %39 : vector<8xf32> to vector<8x1xf32>
    %cst_15 = arith.constant 0.000000e+00 : f32
    %41 = vector.broadcast %cst_15 : f32 to vector<8x16xf32>
    %42 = arith.select %32, %35, %41 : vector<8x16xi1>, vector<8x16xf32>
    %cst_16 = arith.constant dense<0.000000e+00> : vector<8xf32>
    %43 = vector.multi_reduction <add>, %42, %cst_16 [1] : vector<8x16xf32> to vector<8xf32>
    %44 = vector.shape_cast %43 : vector<8xf32> to vector<8x1xf32>
    %45 = math.log %40 : vector<8x1xf32>
    %cst_17 = arith.constant 3.000000e+01 : f32
    %46 = vector.broadcast %cst_17 : f32 to vector<8x1xf32>
    %47 = arith.addf %46, %45 : vector<8x1xf32>
    %48 = arith.subf %47, %44 : vector<8x1xf32>
    %c0_18 = arith.constant 0 : index
    %c0_19 = arith.constant 0 : index
    %49 = vector.load %arg3[%c0_18, %c0_19] : memref<8x1xf32, #tpu.memory_space<vmem>>, vector<8x1xf32>
    tpu.vector_store %arg3[%c0_18, %c0_19], %48 {strides = array<i32>} : memref<8x1xf32, #tpu.memory_space<vmem>>, vector<8x1xf32>,
    return
  }
  func.func @transform_0(%arg0: i32) -> (i32, i32) {
    %c0_i32 = arith.constant 0 : i32
    %c0_i32_0 = arith.constant 0 : i32
    return %arg0, %c0_i32 : i32, i32
  }
  func.func @transform_1(%arg0: i32) -> (i32, i32) {
    %c0_i32 = arith.constant 0 : i32
    %c0_i32_0 = arith.constant 0 : i32
    return %arg0, %c0_i32 : i32, i32
  }
  func.func @transform_2(%arg0: i32) -> (i32, i32) {
    %c0_i32 = arith.constant 0 : i32
    %c0_i32_0 = arith.constant 0 : i32
    return %arg0, %c0_i32 : i32, i32
  }
}

</mosaic_0001>

<llo_original>
// kernel: tpu_custom_call.1
$region0: #{tpu_custom_call.1}
  #allocation0 [shape = 'u32[]', space=smem, size = 0x4, offset = 0x4, fixed_abs, tag = 'smem constant byte address 0x4 - core index']
  #allocation1 [shape = 'u32[144,128]{1,0:T(1,128)}', space=vmem, size = 0x12000, scoped, tag = 'internal scratch']
  %s0 = inlined_call_operand.vmem [shape: f32[8,16], index: 0, kind: input, shape index: {}]
  %s1 = inlined_call_operand.vmem [shape: s32[8,1], index: 1, kind: input, shape index: {}]
  %s2 = inlined_call_operand.vmem [shape: f32[8,1], index: 2, kind: output, shape index: {}]
  %s3 = sld [smem:[#allocation0]]
  $region18: #{tpu_custom_call.1} parent=0
    _
  %s5 = ssub.s32 1, %s3
  %s6 = scalar_select 0, %s5, %s3
  // Predicated region
  $region2: #{tpu_custom_call.1} parent=0 // pred_check
    _
  $region3: #{tpu_custom_call.1} parent=0 // pred_check_branch
    %8 = sbr.rel (0) target = $region5
  $region4: #{tpu_custom_call.1} parent=0 // pred_region
    _
  $region5: #{tpu_custom_call.1} parent=0 // pred_fallthru
    _
  // Predicated region
  $region6: #{tpu_custom_call.1} parent=0 // pred_check
    _
  $region7: #{tpu_custom_call.1} parent=0 // pred_check_branch
    %10 = sbr.rel (0) target = $region9
  $region8: #{tpu_custom_call.1} parent=0 // pred_region
    _
  $region9: #{tpu_custom_call.1} parent=0 // pred_fallthru
    _
  %v11 = vld [vmem:[%s0] sm:$0xff]
  %v12 = vmul.f32 %v11, %v11
  %vm13 = vcmask 130048
  %v14 = vsel %vm13, %v12, 0.0
  %15 = vadd.xlane.f32.xlu0 %v14
  %v16 = vpop.xlane.xlu0 %15
  %v17 = vrsqrt.pop %v16
  %v18 = vmul.f32 %v16, %v17
  %vm19 = vcmp.eq.f32.partialorder %v16, inf
  %v20 = vsel %vm19, %v16, %v18
  %vm21 = vcmp.eq.f32.partialorder %v16, 0.0
  %v22 = vand.u32 %v16, 2147483648
  %v23 = vsel %vm21, %v22, %v20
  %v24 = vmax.f32 %v23, 1e-12
  %v25 = vrcp.pop %v24
  %v26 = vmul.f32 1.0, %v25
  %v27 = vmul.f32 %v11, %v26
  %v28 = vmul.f32 %v27, %v27
  %v29 = vsub.f32 1.0, %v28
  %v30 = vmax.f32 %v29, 0.0
  %v31 = vrsqrt.pop %v30
  %v32 = vmul.f32 %v30, %v31
  %vm33 = vcmp.eq.f32.partialorder %v30, inf
  %v34 = vsel %vm33, %v30, %v32
  %vm35 = vcmp.eq.f32.partialorder %v30, 0.0
  %v36 = vand.u32 %v30, 2147483648
  %v37 = vsel %vm35, %v36, %v34
  %v38 = vmul.f32 %v27, 0.9800666
  %v39 = vmul.f32 %v37, 0.19866933
  %v40 = vsub.f32 %v38, %v39
  %v41 = vsub.f32 %v27, -0.9800666
  %vm42 = vcmp.gt.f32.partialorder %v41, 0.0
  %v43 = vsub.f32 %v27, 0.039733864
  %v44 = vsel %vm42, %v40, %v43
  %v45 = vlaneseq
  %v46 = vand.u32 %v45, 127
  %v47 = vld [vmem:[%s1] sm:$0xff]
  %48 = vset.pattern.permute.xlu0 0
  %49 = vperm.xlu0 %48, %v47
  %v50 = vpop.permute.xlu0 %49
  %vm51 = vcmp.eq.s32.totalorder %v46, %v50
  %v52 = vsel %vm51, %v44, %v27
  %v53 = vmul.f32 %v52, 30.0
  %v54 = vsub.f32 %v53, 30.0
  %v55 = vmul.f32 %v54, 1.442695
  %v56 = vpow.pop %v55
  %v57 = vsel %vm13, %v56, 0.0
  %58 = vadd.xlane.f32.xlu0 %v57
  %v59 = vpop.xlane.xlu0 %58
  %v60 = vsel %vm51, %v53, 0.0
  %v61 = vsel %vm13, %v60, 0.0
  %62 = vadd.xlane.f32.xlu0 %v61
  %v63 = vpop.xlane.xlu0 %62
  %v64 = vlog2.pop %v59
  %v65 = vmul.f32 %v64, 0.6931472
  %v66 = vadd.f32 %v65, 30.0
  %v67 = vsub.f32 %v66, %v63
  %vm68 = vcmask 7168
  %69 = vst.msk [vmem:[%s2] sm:$0xff] %vm68, %v67
  // Predicated region
  $region10: #{tpu_custom_call.1} parent=0 // pred_check
    _
  $region11: #{tpu_custom_call.1} parent=0 // pred_check_branch
    %71 = sbr.rel (0) target = $region13
  $region12: #{tpu_custom_call.1} parent=0 // pred_region
    _
  $region13: #{tpu_custom_call.1} parent=0 // pred_fallthru
    _
  // Predicated region
  $region14: #{tpu_custom_call.1} parent=0 // pred_check
    _
  $region15: #{tpu_custom_call.1} parent=0 // pred_check_branch
    %73 = sbr.rel (0) target = $region17
  $region16: #{tpu_custom_call.1} parent=0 // pred_region
    _
  $region17: #{tpu_custom_call.1} parent=0 // pred_fallthru
    _

</llo_original>
